<compile_context>
chip_gen: v5e
topology: v5e:2x2
jax: 0.10.0
libtpu: 0.0.40
codegen_flags: <defaults>
</compile_context>

<pallas_src>
import jax
import jax.numpy as jnp
from jax.experimental import pallas as pl
from jax.experimental.pallas import tpu as pltpu


# Channel counts below this use the f32 VPU broadcast-FMA path; above it the
# MXU is reasonably utilized and wins.
_MXU_MIN_CHANNELS = 64


def _vpu_matmul(w, inp):
    """(Cout, Cin) @ (Cin, T) via unrolled VPU broadcast-FMA (pure f32, no MXU)."""
    _, cin = w.shape
    acc = w[:, 0:1] * inp[0:1, :]
    for c in range(1, cin):
        acc = acc + w[:, c:c + 1] * inp[c:c + 1, :]
    return acc


def _attention_gate_kernel(g_ref, x_ref, wg_ref, wx_ref, bgx_ref,
                           wpsi_ref, bpsi_ref, o_ref):
    # Per grid step:
    #   g_ref   : (1, F_g, T)   one batch element, one lane-dense HW tile
    #   x_ref   : (1, F_l, T)
    #   wg_ref  : (F_int, F_g)  resident 1x1 conv weight (Cout, Cin)
    #   wx_ref  : (F_int, F_l)
    #   bgx_ref : (F_int, 1)    b_g + b_x (only ever appear summed)
    #   wpsi_ref: (F_int, 1)    psi weight as a column (for VPU broadcast)
    #   bpsi_ref: (1, 1) SMEM   psi bias scalar
    #   o_ref   : (1, F_l, T)
    f_int, f_g = wg_ref.shape
    _, f_l = wx_ref.shape

    # Upcast to f32 for all elementwise work (v5e has no bf16 VPU/EUP path);
    # makes the kernel dtype-agnostic for bf16 activations.
    g2d = g_ref[0].astype(jnp.float32)            # (F_g, T)
    x2d = x_ref[0].astype(jnp.float32)            # (F_l, T)
    wg = wg_ref[...]
    wx = wx_ref[...]

    if max(f_int, f_g, f_l) >= _MXU_MIN_CHANNELS:
        # Big channels: MXU with f32 accumulation.
        a = (jnp.dot(wg, g2d, preferred_element_type=jnp.float32)
             + jnp.dot(wx, x2d, preferred_element_type=jnp.float32))
    else:
        # Small channels: MXU would be <3% utilized; a few VPU FMAs hide under DMA.
        a = _vpu_matmul(wg, g2d) + _vpu_matmul(wx, x2d)

    a = jnp.maximum(a + bgx_ref[...], 0.0)        # relu -> (F_int, T) f32

    # psi 1x1 conv has a single output channel: VPU broadcast-multiply + XLU
    # sublane reduce instead of a 1-row MXU matmul (different VLIW slots).
    z = jnp.sum(a * wpsi_ref[...], axis=0, keepdims=True) + bpsi_ref[0, 0]
    psi = pl.reciprocal(1.0 + jnp.exp(-z), approx=True)   # sigmoid on the EUP

    # Gate x: sublane broadcast of psi over F_l channels, lane-dense store.
    o_ref[0] = (x2d * psi).astype(o_ref.dtype)


def _pick_hw_tile(hw, per_lane_bytes, target=2048, vmem_budget=8 << 20):
    """Largest lane-dense (multiple-of-128) tile that divides hw, is <= `target`
    lanes and keeps the per-step working set under `vmem_budget` (headroom for
    double-buffering and v7x's 64 MiB VMEM / two TensorCores)."""
    if hw % 128 != 0:
        return hw                                   # full-extent block (legal)
    budget_lanes = max(128, (vmem_budget // max(per_lane_bytes, 1)) // 128 * 128)
    t = max(128, (min(hw, target, budget_lanes) // 128) * 128)
    while hw % t != 0:
        t -= 128
    return t


def attention_gate_forward(g_nchw, x_nchw, p, *, hw_tile_lanes=2048):
    """g: (N, F_g, H, W), x: (N, F_l, H, W); returns (N, F_l, H, W) in x.dtype."""
    N, F_g, H, W = g_nchw.shape
    _, F_l, _, _ = x_nchw.shape
    F_int = p["wg"].shape[0]
    HW = H * W

    # Free metadata reshapes: NCHW is already channels-major / spatial-minor.
    g2 = g_nchw.reshape(N, F_g, HW)
    x2 = x_nchw.reshape(N, F_l, HW)

    wg = p["wg"].astype(jnp.float32)                          # (F_int, F_g)
    wx = p["wx"].astype(jnp.float32)                          # (F_int, F_l)
    bgx = (p["bg"] + p["bx"]).reshape(F_int, 1).astype(jnp.float32)
    wpsi = p["wpsi"].reshape(F_int, 1).astype(jnp.float32)    # column for VPU bcast
    bpsi = p["bpsi"].reshape(1, 1).astype(jnp.float32)        # SMEM scalar

    act_bytes = jnp.dtype(x_nchw.dtype).itemsize
    # Per-lane VMEM bytes: double-buffered g/x/out tiles + f32 intermediates.
    per_lane = (2 * (F_g + 2 * F_l) * act_bytes
                + (F_g + F_l + 2 * F_int + 2) * 4)
    t_hw = _pick_hw_tile(HW, per_lane, target=hw_tile_lanes)
    if HW % t_hw != 0:
        t_hw = HW
    n_hw = HW // t_hw

    cost = pl.CostEstimate(
        flops=2 * N * HW * F_int * (F_g + F_l + 1) + 4 * N * HW * F_l,
        transcendentals=N * HW,
        bytes_accessed=act_bytes * N * HW * (F_g + 2 * F_l)
                       + 4 * (F_int * (F_g + F_l + 2) + 1),
    )

    out = pl.pallas_call(
        _attention_gate_kernel,
        out_shape=jax.ShapeDtypeStruct((N, F_l, HW), x_nchw.dtype),
        grid=(N, n_hw),
        in_specs=[
            pl.BlockSpec((1, F_g, t_hw), lambda n, t: (n, 0, t)),
            pl.BlockSpec((1, F_l, t_hw), lambda n, t: (n, 0, t)),
            pl.BlockSpec((F_int, F_g), lambda n, t: (0, 0)),   # weights resident
            pl.BlockSpec((F_int, F_l), lambda n, t: (0, 0)),
            pl.BlockSpec((F_int, 1), lambda n, t: (0, 0)),
            pl.BlockSpec((F_int, 1), lambda n, t: (0, 0)),
            pl.BlockSpec(memory_space=pltpu.MemorySpace.SMEM),  # psi bias scalar
        ],
        out_specs=pl.BlockSpec((1, F_l, t_hw), lambda n, t: (n, 0, t)),
        compiler_params=pltpu.CompilerParams(
            dimension_semantics=("parallel", "parallel")),
        cost_estimate=cost,
    )(g2, x2, wg, wx, bgx, wpsi, bpsi)

    return out.reshape(N, F_l, H, W)


# ----------------------------------------------------------------------------
# Pure-JAX reference (for sanity checking the Pallas path).
# ----------------------------------------------------------------------------
def _ref_forward(g, x, p):
    def conv1x1(t, w, b):
        y = jnp.einsum("oc,nchw->nohw", w, t)
        return y + b.reshape(1, -1, 1, 1)

    a = jnp.maximum(conv1x1(g, p["wg"], p["bg"])
                    + conv1x1(x, p["wx"], p["bx"]), 0.0)
    psi = jax.nn.sigmoid(conv1x1(a, p["wpsi"], p["bpsi"]))
    return x * psi


if __name__ == "__main__":
    key = jax.random.PRNGKey(0)
    N, F_g, F_l, F_int, H, W = 2, 4, 4, 8, 16, 16
    ks = jax.random.split(key, 8)

    g = jax.random.normal(ks[0], (N, F_g, H, W), jnp.float32)
    x = jax.random.normal(ks[1], (N, F_l, H, W), jnp.float32)

    # Deterministic synthetic parameters (1x1 conv weights stored as (Cout, Cin)).
    params = {
        "wg":   0.1 * jax.random.normal(ks[2], (F_int, F_g), jnp.float32),
        "bg":   0.1 * jax.random.normal(ks[3], (F_int,), jnp.float32),
        "wx":   0.1 * jax.random.normal(ks[4], (F_int, F_l), jnp.float32),
        "bx":   0.1 * jax.random.normal(ks[5], (F_int,), jnp.float32),
        "wpsi": 0.1 * jax.random.normal(ks[6], (1, F_int), jnp.float32),
        "bpsi": 0.1 * jax.random.normal(ks[7], (1,), jnp.float32),
    }

    out = jax.block_until_ready(attention_gate_forward(g, x, params))
    ref = jax.block_until_ready(_ref_forward(g, x, params))

    assert out.shape == (N, F_l, H, W)
    max_err = float(jnp.max(jnp.abs(out - ref)))
    assert max_err < 1e-2, f"mismatch vs reference: {max_err}"

    print("KERNEL_OK")
</pallas_src>

<mosaic_0001>
module attributes {stable_mosaic.version = 11 : i64} {
  func.func @_attention_gate_kernel(%arg0: i32, %arg1: i32, %arg2: memref<1x4x256xf32, #tpu.memory_space<vmem>>, %arg3: memref<1x4x256xf32, #tpu.memory_space<vmem>>, %arg4: memref<8x4xf32, #tpu.memory_space<vmem>>, %arg5: memref<8x4xf32, #tpu.memory_space<vmem>>, %arg6: memref<8x1xf32, #tpu.memory_space<vmem>>, %arg7: memref<8x1xf32, #tpu.memory_space<vmem>>, %arg8: memref<1x1xf32, #tpu.memory_space<smem>>, %arg9: memref<1x4x256xf32, #tpu.memory_space<vmem>>) attributes {dimension_semantics = [#tpu.dimension_semantics<parallel>, #tpu.dimension_semantics<parallel>], iteration_bounds = array<i64: 2, 1>, scalar_prefetch = 0 : i64, scratch_operands = 0 : i64, tpu.core_type = #tpu.core_type<tc>, window_params = [{transform_indices = @transform_0, window_bounds = array<i64: 1, 4, 256>}, {transform_indices = @transform_1, window_bounds = array<i64: 1, 4, 256>}, {pipeline_mode = #tpu.pipeline_mode<synchronous>, transform_indices = @transform_2, window_bounds = array<i64: 8, 4>}, {pipeline_mode = #tpu.pipeline_mode<synchronous>, transform_indices = @transform_3, window_bounds = array<i64: 8, 4>}, {pipeline_mode = #tpu.pipeline_mode<synchronous>, transform_indices = @transform_4, window_bounds = array<i64: 8, 1>}, {pipeline_mode = #tpu.pipeline_mode<synchronous>, transform_indices = @transform_5, window_bounds = array<i64: 8, 1>}, {transform_indices = @transform_6, window_bounds = array<i64: 1, 1>}, {transform_indices = @transform_7, window_bounds = array<i64: 1, 4, 256>}]} {
    %c0 = arith.constant 0 : index
    %c0_0 = arith.constant 0 : index
    %c0_1 = arith.constant 0 : index
    %0 = vector.load %arg2[%c0, %c0_0, %c0_1] : memref<1x4x256xf32, #tpu.memory_space<vmem>>, vector<1x4x256xf32>
    %1 = vector.shape_cast %0 : vector<1x4x256xf32> to vector<4x256xf32>
    %c0_2 = arith.constant 0 : index
    %c0_3 = arith.constant 0 : index
    %c0_4 = arith.constant 0 : index
    %2 = vector.load %arg3[%c0_2, %c0_3, %c0_4] : memref<1x4x256xf32, #tpu.memory_space<vmem>>, vector<1x4x256xf32>
    %3 = vector.shape_cast %2 : vector<1x4x256xf32> to vector<4x256xf32>
    %c0_5 = arith.constant 0 : index
    %c0_6 = arith.constant 0 : index
    %4 = vector.load %arg4[%c0_5, %c0_6] : memref<8x4xf32, #tpu.memory_space<vmem>>, vector<8x4xf32>
    %c0_7 = arith.constant 0 : index
    %c0_8 = arith.constant 0 : index
    %5 = vector.load %arg5[%c0_7, %c0_8] : memref<8x4xf32, #tpu.memory_space<vmem>>, vector<8x4xf32>
    %6 = vector.extract_strided_slice %4 {offsets = [0, 0], sizes = [8, 1], strides = [1, 1]} : vector<8x4xf32> to vector<8x1xf32>
    %7 = vector.extract_strided_slice %1 {offsets = [0, 0], sizes = [1, 256], strides = [1, 1]} : vector<4x256xf32> to vector<1x256xf32>
    %8 = vector.broadcast %6 : vector<8x1xf32> to vector<8x256xf32>
    %9 = vector.broadcast %7 : vector<1x256xf32> to vector<8x256xf32>
    %10 = arith.mulf %8, %9 : vector<8x256xf32>
    %11 = vector.extract_strided_slice %4 {offsets = [0, 1], sizes = [8, 1], strides = [1, 1]} : vector<8x4xf32> to vector<8x1xf32>
    %12 = vector.extract_strided_slice %1 {offsets = [1, 0], sizes = [1, 256], strides = [1, 1]} : vector<4x256xf32> to vector<1x256xf32>
    %13 = vector.broadcast %11 : vector<8x1xf32> to vector<8x256xf32>
    %14 = vector.broadcast %12 : vector<1x256xf32> to vector<8x256xf32>
    %15 = arith.mulf %13, %14 : vector<8x256xf32>
    %16 = arith.addf %10, %15 : vector<8x256xf32>
    %17 = vector.extract_strided_slice %4 {offsets = [0, 2], sizes = [8, 1], strides = [1, 1]} : vector<8x4xf32> to vector<8x1xf32>
    %18 = vector.extract_strided_slice %1 {offsets = [2, 0], sizes = [1, 256], strides = [1, 1]} : vector<4x256xf32> to vector<1x256xf32>
    %19 = vector.broadcast %17 : vector<8x1xf32> to vector<8x256xf32>
    %20 = vector.broadcast %18 : vector<1x256xf32> to vector<8x256xf32>
    %21 = arith.mulf %19, %20 : vector<8x256xf32>
    %22 = arith.addf %16, %21 : vector<8x256xf32>
    %23 = vector.extract_strided_slice %4 {offsets = [0, 3], sizes = [8, 1], strides = [1, 1]} : vector<8x4xf32> to vector<8x1xf32>
    %24 = vector.extract_strided_slice %1 {offsets = [3, 0], sizes = [1, 256], strides = [1, 1]} : vector<4x256xf32> to vector<1x256xf32>
    %25 = vector.broadcast %23 : vector<8x1xf32> to vector<8x256xf32>
    %26 = vector.broadcast %24 : vector<1x256xf32> to vector<8x256xf32>
    %27 = arith.mulf %25, %26 : vector<8x256xf32>
    %28 = arith.addf %22, %27 : vector<8x256xf32>
    %29 = vector.extract_strided_slice %5 {offsets = [0, 0], sizes = [8, 1], strides = [1, 1]} : vector<8x4xf32> to vector<8x1xf32>
    %30 = vector.extract_strided_slice %3 {offsets = [0, 0], sizes = [1, 256], strides = [1, 1]} : vector<4x256xf32> to vector<1x256xf32>
    %31 = vector.broadcast %29 : vector<8x1xf32> to vector<8x256xf32>
    %32 = vector.broadcast %30 : vector<1x256xf32> to vector<8x256xf32>
    %33 = arith.mulf %31, %32 : vector<8x256xf32>
    %34 = vector.extract_strided_slice %5 {offsets = [0, 1], sizes = [8, 1], strides = [1, 1]} : vector<8x4xf32> to vector<8x1xf32>
    %35 = vector.extract_strided_slice %3 {offsets = [1, 0], sizes = [1, 256], strides = [1, 1]} : vector<4x256xf32> to vector<1x256xf32>
    %36 = vector.broadcast %34 : vector<8x1xf32> to vector<8x256xf32>
    %37 = vector.broadcast %35 : vector<1x256xf32> to vector<8x256xf32>
    %38 = arith.mulf %36, %37 : vector<8x256xf32>
    %39 = arith.addf %33, %38 : vector<8x256xf32>
    %40 = vector.extract_strided_slice %5 {offsets = [0, 2], sizes = [8, 1], strides = [1, 1]} : vector<8x4xf32> to vector<8x1xf32>
    %41 = vector.extract_strided_slice %3 {offsets = [2, 0], sizes = [1, 256], strides = [1, 1]} : vector<4x256xf32> to vector<1x256xf32>
    %42 = vector.broadcast %40 : vector<8x1xf32> to vector<8x256xf32>
    %43 = vector.broadcast %41 : vector<1x256xf32> to vector<8x256xf32>
    %44 = arith.mulf %42, %43 : vector<8x256xf32>
    %45 = arith.addf %39, %44 : vector<8x256xf32>
    %46 = vector.extract_strided_slice %5 {offsets = [0, 3], sizes = [8, 1], strides = [1, 1]} : vector<8x4xf32> to vector<8x1xf32>
    %47 = vector.extract_strided_slice %3 {offsets = [3, 0], sizes = [1, 256], strides = [1, 1]} : vector<4x256xf32> to vector<1x256xf32>
    %48 = vector.broadcast %46 : vector<8x1xf32> to vector<8x256xf32>
    %49 = vector.broadcast %47 : vector<1x256xf32> to vector<8x256xf32>
    %50 = arith.mulf %48, %49 : vector<8x256xf32>
    %51 = arith.addf %45, %50 : vector<8x256xf32>
    %52 = arith.addf %28, %51 : vector<8x256xf32>
    %c0_9 = arith.constant 0 : index
    %c0_10 = arith.constant 0 : index
    %53 = vector.load %arg6[%c0_9, %c0_10] : memref<8x1xf32, #tpu.memory_space<vmem>>, vector<8x1xf32>
    %54 = vector.broadcast %53 : vector<8x1xf32> to vector<8x256xf32>
    %55 = arith.addf %52, %54 : vector<8x256xf32>
    %cst = arith.constant 0.000000e+00 : f32
    %56 = vector.broadcast %cst : f32 to vector<8x256xf32>
    %57 = arith.maximumf %55, %56 : vector<8x256xf32>
    %c0_11 = arith.constant 0 : index
    %c0_12 = arith.constant 0 : index
    %58 = vector.load %arg7[%c0_11, %c0_12] : memref<8x1xf32, #tpu.memory_space<vmem>>, vector<8x1xf32>
    %59 = vector.broadcast %58 : vector<8x1xf32> to vector<8x256xf32>
    %60 = arith.mulf %57, %59 : vector<8x256xf32>
    %cst_13 = arith.constant dense<0.000000e+00> : vector<256xf32>
    %61 = vector.multi_reduction <add>, %60, %cst_13 [0] : vector<8x256xf32> to vector<256xf32>
    %62 = vector.shape_cast %61 : vector<256xf32> to vector<1x256xf32>
    %c0_14 = arith.constant 0 : index
    %c0_15 = arith.constant 0 : index
    %63 = memref.load %arg8[%c0_14, %c0_15] : memref<1x1xf32, #tpu.memory_space<smem>>
    %64 = vector.broadcast %63 : f32 to vector<1x256xf32>
    %65 = arith.addf %62, %64 : vector<1x256xf32>
    %cst_16 = arith.constant 0.000000e+00 : f32
    %66 = vector.broadcast %cst_16 : f32 to vector<1x256xf32>
    %67 = arith.subf %66, %65 : vector<1x256xf32>
    %68 = math.exp %67 : vector<1x256xf32>
    %cst_17 = arith.constant 1.000000e+00 : f32
    %69 = vector.broadcast %cst_17 : f32 to vector<1x256xf32>
    %70 = arith.addf %69, %68 : vector<1x256xf32>
    %71 = tpu.reciprocal %70 {approx = true} : vector<1x256xf32> -> vector<1x256xf32>
    %72 = vector.broadcast %71 : vector<1x256xf32> to vector<4x256xf32>
    %73 = arith.mulf %3, %72 : vector<4x256xf32>
    %c0_18 = arith.constant 0 : index
    %c0_19 = arith.constant 0 : index
    %c0_20 = arith.constant 0 : index
    %74 = vector.load %arg9[%c0_18, %c0_19, %c0_20] : memref<1x4x256xf32, #tpu.memory_space<vmem>>, vector<1x4x256xf32>
    %75 = vector.shape_cast %74 : vector<1x4x256xf32> to vector<4x256xf32>
    %76 = vector.shape_cast %73 : vector<4x256xf32> to vector<1x4x256xf32>
    tpu.vector_store %arg9[%c0_18, %c0_19, %c0_20], %76 {strides = array<i32>} : memref<1x4x256xf32, #tpu.memory_space<vmem>>, vector<1x4x256xf32>,
    return
  }
  func.func @transform_0(%arg0: i32, %arg1: i32) -> (i32, i32, i32) {
    %c0_i32 = arith.constant 0 : i32
    %c0_i32_0 = arith.constant 0 : i32
    return %arg0, %c0_i32, %arg1 : i32, i32, i32
  }
  func.func @transform_1(%arg0: i32, %arg1: i32) -> (i32, i32, i32) {
    %c0_i32 = arith.constant 0 : i32
    %c0_i32_0 = arith.constant 0 : i32
    return %arg0, %c0_i32, %arg1 : i32, i32, i32
  }
  func.func @transform_2(%arg0: i32, %arg1: i32) -> (i32, i32) {
    %c0_i32 = arith.constant 0 : i32
    %c0_i32_0 = arith.constant 0 : i32
    %c0_i32_1 = arith.constant 0 : i32
    return %c0_i32, %c0_i32_0 : i32, i32
  }
  func.func @transform_3(%arg0: i32, %arg1: i32) -> (i32, i32) {
    %c0_i32 = arith.constant 0 : i32
    %c0_i32_0 = arith.constant 0 : i32
    %c0_i32_1 = arith.constant 0 : i32
    return %c0_i32, %c0_i32_0 : i32, i32
  }
  func.func @transform_4(%arg0: i32, %arg1: i32) -> (i32, i32) {
    %c0_i32 = arith.constant 0 : i32
    %c0_i32_0 = arith.constant 0 : i32
    %c0_i32_1 = arith.constant 0 : i32
    return %c0_i32, %c0_i32_0 : i32, i32
  }
  func.func @transform_5(%arg0: i32, %arg1: i32) -> (i32, i32) {
    %c0_i32 = arith.constant 0 : i32
    %c0_i32_0 = arith.constant 0 : i32
    %c0_i32_1 = arith.constant 0 : i32
    return %c0_i32, %c0_i32_0 : i32, i32
  }
  func.func @transform_6(%arg0: i32, %arg1: i32) -> (i32, i32) {
    %c0_i32 = arith.constant 0 : i32
    %c0_i32_0 = arith.constant 0 : i32
    %c0_i32_1 = arith.constant 0 : i32
    return %c0_i32, %c0_i32_0 : i32, i32
  }
  func.func @transform_7(%arg0: i32, %arg1: i32) -> (i32, i32, i32) {
    %c0_i32 = arith.constant 0 : i32
    %c0_i32_0 = arith.constant 0 : i32
    return %arg0, %c0_i32, %arg1 : i32, i32, i32
  }
}

</mosaic_0001>

<llo_original>
// kernel: tpu_custom_call.1
$region0: #{tpu_custom_call.1}
  #allocation0 [shape = 'u32[]', space=smem, size = 0x4, offset = 0x4, fixed_abs, tag = 'smem constant byte address 0x4 - core index']
  #allocation1 [shape = 'u32[72,128]{1,0:T(1,128)}', space=vmem, size = 0x9000, scoped, tag = 'internal scratch']
  #allocation2 [shape = 'f32[1,1]{1,0:T(1,128)S(6)}', space=smem, size = 0x200, scoped, tag = 'scoped memory for tpu_custom_call.1']
  %s0 = inlined_call_operand.vmem [shape: f32[2,4,256], index: 0, kind: input, shape index: {}]
  %s1 = inlined_call_operand.vmem [shape: f32[2,4,256], index: 1, kind: input, shape index: {}]
  %s2 = inlined_call_operand.vmem [shape: f32[8,4], index: 2, kind: input, shape index: {}]
  %s3 = inlined_call_operand.vmem [shape: f32[8,4], index: 3, kind: input, shape index: {}]
  %s4 = inlined_call_operand.vmem [shape: f32[8,1], index: 4, kind: input, shape index: {}]
  %s5 = inlined_call_operand.vmem [shape: f32[8,1], index: 5, kind: input, shape index: {}]
  %s6 = inlined_call_operand.<no memory space> [shape: f32[1,1], index: 6, kind: input, shape index: {}]
  %s7 = inlined_call_operand.hbm [shape: f32[2,4,256], index: 7, kind: output, shape index: {}]
  %s8 = sld [smem:[#allocation0]]
  $region61: #{tpu_custom_call.1} parent=0
    _
  %s10 = ssub.s32 1, %s8
  %s11 = scalar_select 0, %s10, %s8
  %12 = sst [smem:[#allocation2]] %s6
  $region1: #{tpu_custom_call.1} parent=0
    #allocation3 [shape = 'u8[8192]{0}', space=vmem, size = 0x2000, scoped, tag = 'output window, operand 0']
    #allocation4 [shape = 's32[2]{0}', space=sflag, size = 0x8, scoped, tag = 'scoped memory for tpu_custom_call.1']
    %13 = vsyncpa [#allocation4], 0
    %s14 = scalar_lea.sflag [#allocation4], 1
    %15 = vsyncpa %s14, 0
    loop: start=0, step=1, limit=4
    $region2: #{tpu_custom_call.1} parent=1 // loop_pre_header
      _
    $region3: #{tpu_custom_call.1} parent=1 // loop_header
      %s17 = sphi 0, %s21
      %p18 = scmp.ge.s32.totalorder %s17, 4
      %s24 = sphi 0, %s36
      %s25 = sphi 0, %s32
      %s26 = sphi 0, %s24
      %s27 = sphi 0, %s25
      %s28 = sphi 0, %s26
      %s29 = sphi 0, %s27
      %s41 = sphi 0, %s43
      %s44 = sphi 0, %s41
      %s45 = sphi 0, %s44
      %s61 = sphi 0, %s45
      %s69 = sphi 0, %s71
      %s72 = sphi 0, %s69
      %s73 = sphi 0, %s72
      %s89 = sphi 0, %s73
      %s93 = sphi 0, %s93
      %s95 = sphi 0, %s93
      %s96 = sphi 0, %s95
      %s110 = sphi 0, %s96
      %s114 = sphi 0, %s114
      %s116 = sphi 0, %s114
      %s117 = sphi 0, %s116
      %s131 = sphi 0, %s117
      %s135 = sphi 0, %s135
      %s137 = sphi 0, %s135
      %s138 = sphi 0, %s137
      %s152 = sphi 0, %s138
      %s156 = sphi 0, %s156
      %s158 = sphi 0, %s156
      %s159 = sphi 0, %s158
      %s173 = sphi 0, %s159
      %s177 = sphi 0, %s177
      %s179 = sphi 0, %s177
      %s180 = sphi 0, %s179
      %s194 = sphi 0, %s180
      %s202 = sphi 0, %s204
      %s205 = sphi 0, %s202
      %s206 = sphi 0, %s205
      %s222 = sphi 0, %s206
    $region4: #{tpu_custom_call.1} parent=1 // loop_header_branch
      %20 = sbr.rel (%p18) target = $region8
    $region5: #{tpu_custom_call.1} parent=1 // loop_body
      %s22 = ssub.s32 %s17, 1
      %s23 = ssub.s32 %s17, 2
      %s30 = sadd.s32 1, %s25
      %p31 = scmp.ge.s32.totalorder %s30, 1
      %s32 = scalar_select %p31, 0, %s30
      %s33 = sadd.s32 1, %s24
      %s34 = scalar_select %p31, %s33, %s24
      %p35 = scmp.ge.s32.totalorder %s34, 2
      %s36 = scalar_select %p35, 0, %s34
      %s37 = ssub.s32 %s24, %s36
      %s38 = ssub.s32 %s25, %s32
      %s39 = sor.u32 %s37, %s38
      %p40 = scmp.eq.s32.totalorder %s39, 0
      %s42 = sadd.s32 %s41, 1
      %s43 = scalar_select %p40, %s41, %s42
      %p46 = pneg %p40
      %p47 = scmp.eq.s32.totalorder %s17, 1
      %p48 = por %p46, %p47
      %p49 = scmp.ne.s32.totalorder %s41, %s44
      %p50 = scmp.eq.s32.totalorder %s17, 0
      %p51 = por %p49, %p50
      %p52 = scmp.ne.s32.totalorder %s41, %s44
      %p53 = scmp.eq.s32.totalorder %s22, 1
      %p54 = por %p52, %p53
      %p55 = scmp.ne.s32.totalorder %s44, %s45
      %p56 = scmp.eq.s32.totalorder %s22, 0
      %p57 = por %p55, %p56
      %p58 = scmp.ne.s32.totalorder %s44, %s45
      %p59 = scmp.eq.s32.totalorder %s23, 1
      %p60 = por %p58, %p59
      %p62 = scmp.ne.s32.totalorder %s45, %s61
      %p63 = scmp.eq.s32.totalorder %s23, 0
      %p64 = por %p62, %p63
      %s65 = ssub.s32 %s24, %s36
      %s66 = ssub.s32 %s25, %s32
      %s67 = sor.u32 %s65, %s66
      %p68 = scmp.eq.s32.totalorder %s67, 0
      %s70 = sadd.s32 %s69, 1
      %s71 = scalar_select %p68, %s69, %s70
      %p74 = pneg %p68
      %p75 = scmp.eq.s32.totalorder %s17, 1
      %p76 = por %p74, %p75
      %p77 = scmp.ne.s32.totalorder %s69, %s72
      %p78 = scmp.eq.s32.totalorder %s17, 0
      %p79 = por %p77, %p78
      %p80 = scmp.ne.s32.totalorder %s69, %s72
      %p81 = scmp.eq.s32.totalorder %s22, 1
      %p82 = por %p80, %p81
      %p83 = scmp.ne.s32.totalorder %s72, %s73
      %p84 = scmp.eq.s32.totalorder %s22, 0
      %p85 = por %p83, %p84
      %p86 = scmp.ne.s32.totalorder %s72, %s73
      %p87 = scmp.eq.s32.totalorder %s23, 1
      %p88 = por %p86, %p87
      %p90 = scmp.ne.s32.totalorder %s73, %s89
      %p91 = scmp.eq.s32.totalorder %s23, 0
      %p92 = por %p90, %p91
      %s94 = sadd.s32 %s93, 1
      %p97 = scmp.eq.s32.totalorder %s17, 1
      %p98 = scmp.ne.s32.totalorder %s93, %s95
      %p99 = scmp.eq.s32.totalorder %s17, 0
      %p100 = por %p98, %p99
      %p101 = scmp.ne.s32.totalorder %s93, %s95
      %p102 = scmp.eq.s32.totalorder %s22, 1
      %p103 = por %p101, %p102
      %p104 = scmp.ne.s32.totalorder %s95, %s96
      %p105 = scmp.eq.s32.totalorder %s22, 0
      %p106 = por %p104, %p105
      %p107 = scmp.ne.s32.totalorder %s95, %s96
      %p108 = scmp.eq.s32.totalorder %s23, 1
      %p109 = por %p107, %p108
      %p111 = scmp.ne.s32.totalorder %s96, %s110
      %p112 = scmp.eq.s32.totalorder %s23, 0
      %p113 = por %p111, %p112
      %s115 = sadd.s32 %s114, 1
      %p118 = scmp.eq.s32.totalorder %s17, 1
      %p119 = scmp.ne.s32.totalorder %s114, %s116
      %p120 = scmp.eq.s32.totalorder %s17, 0
      %p121 = por %p119, %p120
      %p122 = scmp.ne.s32.totalorder %s114, %s116
      %p123 = scmp.eq.s32.totalorder %s22, 1
      %p124 = por %p122, %p123
      %p125 = scmp.ne.s32.totalorder %s116, %s117
      %p126 = scmp.eq.s32.totalorder %s22, 0
      %p127 = por %p125, %p126
      %p128 = scmp.ne.s32.totalorder %s116, %s117
      %p129 = scmp.eq.s32.totalorder %s23, 1
      %p130 = por %p128, %p129
      %p132 = scmp.ne.s32.totalorder %s117, %s131
      %p133 = scmp.eq.s32.totalorder %s23, 0
      %p134 = por %p132, %p133
      %s136 = sadd.s32 %s135, 1
      %p139 = scmp.eq.s32.totalorder %s17, 1
      %p140 = scmp.ne.s32.totalorder %s135, %s137
      %p141 = scmp.eq.s32.totalorder %s17, 0
      %p142 = por %p140, %p141
      %p143 = scmp.ne.s32.totalorder %s135, %s137
      %p144 = scmp.eq.s32.totalorder %s22, 1
      %p145 = por %p143, %p144
      %p146 = scmp.ne.s32.totalorder %s137, %s138
      %p147 = scmp.eq.s32.totalorder %s22, 0
      %p148 = por %p146, %p147
      %p149 = scmp.ne.s32.totalorder %s137, %s138
      %p150 = scmp.eq.s32.totalorder %s23, 1
      %p151 = por %p149, %p150
      %p153 = scmp.ne.s32.totalorder %s138, %s152
      %p154 = scmp.eq.s32.totalorder %s23, 0
      %p155 = por %p153, %p154
      %s157 = sadd.s32 %s156, 1
      %p160 = scmp.eq.s32.totalorder %s17, 1
      %p161 = scmp.ne.s32.totalorder %s156, %s158
      %p162 = scmp.eq.s32.totalorder %s17, 0
      %p163 = por %p161, %p162
      %p164 = scmp.ne.s32.totalorder %s156, %s158
      %p165 = scmp.eq.s32.totalorder %s22, 1
      %p166 = por %p164, %p165
      %p167 = scmp.ne.s32.totalorder %s158, %s159
      %p168 = scmp.eq.s32.totalorder %s22, 0
      %p169 = por %p167, %p168
      %p170 = scmp.ne.s32.totalorder %s158, %s159
      %p171 = scmp.eq.s32.totalorder %s23, 1
      %p172 = por %p170, %p171
      %p174 = scmp.ne.s32.totalorder %s159, %s173
      %p175 = scmp.eq.s32.totalorder %s23, 0
      %p176 = por %p174, %p175
      %s178 = sadd.s32 %s177, 1
      %p181 = scmp.eq.s32.totalorder %s17, 1
      %p182 = scmp.ne.s32.totalorder %s177, %s179
      %p183 = scmp.eq.s32.totalorder %s17, 0
      %p184 = por %p182, %p183
      %p185 = scmp.ne.s32.totalorder %s177, %s179
      %p186 = scmp.eq.s32.totalorder %s22, 1
      %p187 = por %p185, %p186
      %p188 = scmp.ne.s32.totalorder %s179, %s180
      %p189 = scmp.eq.s32.totalorder %s22, 0
      %p190 = por %p188, %p189
      %p191 = scmp.ne.s32.totalorder %s179, %s180
      %p192 = scmp.eq.s32.totalorder %s23, 1
      %p193 = por %p191, %p192
      %p195 = scmp.ne.s32.totalorder %s180, %s194
      %p196 = scmp.eq.s32.totalorder %s23, 0
      %p197 = por %p195, %p196
      %s198 = ssub.s32 %s24, %s36
      %s199 = ssub.s32 %s25, %s32
      %s200 = sor.u32 %s198, %s199
      %p201 = scmp.eq.s32.totalorder %s200, 0
      %s203 = sadd.s32 %s202, 1
      %s204 = scalar_select %p201, %s202, %s203
      %p207 = pneg %p201
      %p208 = scmp.eq.s32.totalorder %s17, 1
      %p209 = por %p207, %p208
      %p210 = scmp.ne.s32.totalorder %s202, %s205
      %p211 = scmp.eq.s32.totalorder %s17, 0
      %p212 = por %p210, %p211
      %p213 = scmp.ne.s32.totalorder %s202, %s205
      %p214 = scmp.eq.s32.totalorder %s22, 1
      %p215 = por %p213, %p214
      %p216 = scmp.ne.s32.totalorder %s205, %s206
      %p217 = scmp.eq.s32.totalorder %s22, 0
      %p218 = por %p216, %p217
      %p219 = scmp.ne.s32.totalorder %s205, %s206
      %p220 = scmp.eq.s32.totalorder %s23, 1
      %p221 = por %p219, %p220
      %p223 = scmp.ne.s32.totalorder %s206, %s222
      %p224 = scmp.eq.s32.totalorder %s23, 0
      %p225 = por %p223, %p224
      %p226 = scmp.le.s32.totalorder 1, %s17
      %p227 = scmp.lt.s32.totalorder %s17, 3
      %p228 = pnand %p226, %p227
      %p229 = pneg %p228
      // Predicated region
      $region9: #{tpu_custom_call.1} parent=5 // pred_check
        _
      $region10: #{tpu_custom_call.1} parent=5 // pred_check_branch
        %231 = sbr.rel (%p228) target = $region12
      $region11: #{tpu_custom_call.1} parent=5 // pred_region
        %s232 = ssub.s32 %s17, 1
        // Predicated region
        $region13: #{tpu_custom_call.1} parent=11 // pred_check
          %p233 = pneg %p106
        $region14: #{tpu_custom_call.1} parent=11 // pred_check_branch
          %235 = sbr.rel (%p233) target = $region16
        $region15: #{tpu_custom_call.1} parent=11 // pred_region
          _
        $region16: #{tpu_custom_call.1} parent=11 // pred_fallthru
          _
        // Predicated region
        $region17: #{tpu_custom_call.1} parent=11 // pred_check
          %p236 = pneg %p127
        $region18: #{tpu_custom_call.1} parent=11 // pred_check_branch
          %238 = sbr.rel (%p236) target = $region20
        $region19: #{tpu_custom_call.1} parent=11 // pred_region
          _
        $region20: #{tpu_custom_call.1} parent=11 // pred_fallthru
          _
        // Predicated region
        $region21: #{tpu_custom_call.1} parent=11 // pred_check
          %p239 = pneg %p148
        $region22: #{tpu_custom_call.1} parent=11 // pred_check_branch
          %241 = sbr.rel (%p239) target = $region24
        $region23: #{tpu_custom_call.1} parent=11 // pred_region
          _
        $region24: #{tpu_custom_call.1} parent=11 // pred_fallthru
          _
        // Predicated region
        $region25: #{tpu_custom_call.1} parent=11 // pred_check
          %p242 = pneg %p169
        $region26: #{tpu_custom_call.1} parent=11 // pred_check_branch
          %244 = sbr.rel (%p242) target = $region28
        $region27: #{tpu_custom_call.1} parent=11 // pred_region
          _
        $region28: #{tpu_custom_call.1} parent=11 // pred_fallthru
          _
        // Predicated region
        $region29: #{tpu_custom_call.1} parent=11 // pred_check
          %p245 = pneg %p190
        $region30: #{tpu_custom_call.1} parent=11 // pred_check_branch
          %247 = sbr.rel (%p245) target = $region32
        $region31: #{tpu_custom_call.1} parent=11 // pred_region
          _
        $region32: #{tpu_custom_call.1} parent=11 // pred_fallthru
          _
      $region12: #{tpu_custom_call.1} parent=5 // pred_fallthru
        _
      %p248 = scmp.lt.s32.totalorder %s17, 2
      // Predicated region
      $region33: #{tpu_custom_call.1} parent=5 // pred_check
        %p249 = pneg %p248
      $region34: #{tpu_custom_call.1} parent=5 // pred_check_branch
        %251 = sbr.rel (%p249) target = $region36
      $region35: #{tpu_custom_call.1} parent=5 // pred_region
        // Predicated region
        $region37: #{tpu_custom_call.1} parent=35 // pred_check
          %p252 = pneg %p51
        $region38: #{tpu_custom_call.1} parent=35 // pred_check_branch
          %254 = sbr.rel (%p252) target = $region40
        $region39: #{tpu_custom_call.1} parent=35 // pred_region
          %s255 = smul.u32 2, %s25
          %p256 = scmp.lt.s32.totalorder %s24, 1
          %s257 = scalar_select %p256, %s24, 1
          %p258 = scmp.lt.s32.totalorder %s255, 1
          %s259 = scalar_select %p258, %s255, 1
          %s260 = smul.addr %s257, 2
          %s261 = sadd.s32 %s259, %s260
          %s262 = smul.addr %s261, 4
          %s263 = scalar_lea.vmem %s0, %s262
          %s264 = smul.u32 2, %s25
        $region40: #{tpu_custom_call.1} parent=35 // pred_fallthru
          _
        // Predicated region
        $region41: #{tpu_custom_call.1} parent=35 // pred_check
          %p265 = pneg %p79
        $region42: #{tpu_custom_call.1} parent=35 // pred_check_branch
          %267 = sbr.rel (%p265) target = $region44
        $region43: #{tpu_custom_call.1} parent=35 // pred_region
          %s268 = smul.u32 2, %s25
          %p269 = scmp.lt.s32.totalorder %s24, 1
          %s270 = scalar_select %p269, %s24, 1
          %p271 = scmp.lt.s32.totalorder %s268, 1
          %s272 = scalar_select %p271, %s268, 1
          %s273 = smul.addr %s270, 2
          %s274 = sadd.s32 %s272, %s273
          %s275 = smul.addr %s274, 4
          %s276 = scalar_lea.vmem %s1, %s275
          %s277 = smul.u32 2, %s25
        $region44: #{tpu_custom_call.1} parent=35 // pred_fallthru
          _
      $region36: #{tpu_custom_call.1} parent=5 // pred_fallthru
        _
      %p278 = scmp.le.s32.totalorder 1, %s17
      %p279 = scmp.lt.s32.totalorder %s17, 3
      %p280 = pnand %p278, %p279
      %p281 = pneg %p280
      // Predicated region
      $region45: #{tpu_custom_call.1} parent=5 // pred_check
        _
      $region46: #{tpu_custom_call.1} parent=5 // pred_check_branch
        %283 = sbr.rel (%p280) target = $region48
      $region47: #{tpu_custom_call.1} parent=5 // pred_region
        %s284 = ssub.s32 %s17, 1
        %s285 = smul.u32 2, %s27
        %p286 = scmp.lt.s32.totalorder %s26, 1
        %s287 = scalar_select %p286, %s26, 1
        %p288 = scmp.lt.s32.totalorder %s285, 1
        %s289 = scalar_select %p288, %s285, 1
        %s290 = smul.addr %s287, 2
        %s291 = sadd.s32 %s289, %s290
        %s292 = smul.addr %s291, 4
        %s293 = scalar_lea.vmem %s0, %s292
        %p294 = pneg %p57
        %p295 = pneg %p54
        %s296 = smul.u32 2, %s27
        %p297 = scmp.lt.s32.totalorder %s26, 1
        %s298 = scalar_select %p297, %s26, 1
        %p299 = scmp.lt.s32.totalorder %s296, 1
        %s300 = scalar_select %p299, %s296, 1
        %s301 = smul.addr %s298, 2
        %s302 = sadd.s32 %s300, %s301
        %s303 = smul.addr %s302, 4
        %s304 = scalar_lea.vmem %s1, %s303
        %p305 = pneg %p85
        %p306 = pneg %p82
        %p307 = pneg %p106
        %p308 = pneg %p103
        %p309 = pneg %p127
        %p310 = pneg %p124
        %p311 = pneg %p148
        %p312 = pneg %p145
        %p313 = pneg %p169
        %p314 = pneg %p166
        %p315 = pneg %p190
        %p316 = pneg %p187
        %p317 = pneg %p218
        %p318 = pneg %p215
        %s319 = sand.u32 %s205, 1
        %s320 = scalar_lea.sflag [#allocation4], %s319
        %s321 = sand.u32 %s205, 1
        %s322 = smul.addr %s321, 8
        %s323 = scalar_lea.vmem [#allocation3], %s322
        %s324 = smul.u32 2, %s27
        %p325 = scmp.lt.s32.totalorder %s26, 1
        %s326 = scalar_select %p325, %s26, 1
        %p327 = scmp.lt.s32.totalorder %s324, 1
        %s328 = scalar_select %p327, %s324, 1
        %s329 = smul.addr %s326, 2
        %s330 = sadd.s32 %s328, %s329
        %s331 = smul.addr %s330, 4
        %s332 = scalar_lea.vmem %s0, %s331
        %s333 = smul.u32 2, %s27
        %s334 = smul.u32 2, %s27
        %p335 = scmp.lt.s32.totalorder %s26, 1
        %s336 = scalar_select %p335, %s26, 1
        %p337 = scmp.lt.s32.totalorder %s334, 1
        %s338 = scalar_select %p337, %s334, 1
        %s339 = smul.addr %s336, 2
        %s340 = sadd.s32 %s338, %s339
        %s341 = smul.addr %s340, 4
        %s342 = scalar_lea.vmem %s1, %s341
        %s343 = smul.u32 2, %s27
        %s344 = smul.u32 2, %s27
        %v345 = vld [vmem:[%s332] sm:$0xff]
        %v346 = vld [vmem:[%s342] sm:$0xff]
        %v347 = vld [vmem:[%s2] sm:$0xff]
        %v348 = vld [vmem:[%s3] sm:$0xff]
        %350 = vset.pattern.permute.xlu0 0
        %351 = vperm.xlu0 %350, %v347
        %v352 = vpop.permute.xlu0 %351
        %v355 = vperm.slane %v345, 0
        %v356 = vperm.slane %v345, 4
        %v359 = vperm.slane %v355, 0
        %v360 = vperm.slane %v356, 0
        %v361 = vmul.f32 %v352, %v359
        %v362 = vmul.f32 %v352, %v360
        %363 = vset.pattern.permute.xlu0 1
        %364 = vperm.xlu0 %363, %v347
        %v365 = vpop.permute.xlu0 %364
        %v367 = vperm.slane %v345, 1
        %v368 = vperm.slane %v345, 5
        %v371 = vperm.slane %v367, 1
        %v372 = vperm.slane %v368, 1
        %v373 = vmul.f32 %v365, %v371
        %v374 = vmul.f32 %v365, %v372
        %v375 = vadd.f32 %v361, %v373
        %v376 = vadd.f32 %v362, %v374
        %377 = vset.pattern.permute.xlu0 2
        %378 = vperm.xlu0 %377, %v347
        %v379 = vpop.permute.xlu0 %378
        %v381 = vperm.slane %v345, 2
        %v382 = vperm.slane %v345, 6
        %v385 = vperm.slane %v381, 2
        %v386 = vperm.slane %v382, 2
        %v387 = vmul.f32 %v379, %v385
        %v388 = vmul.f32 %v379, %v386
        %v389 = vadd.f32 %v375, %v387
        %v390 = vadd.f32 %v376, %v388
        %391 = vset.pattern.permute.xlu0 3
        %392 = vperm.xlu0 %391, %v347
        %v393 = vpop.permute.xlu0 %392
        %v395 = vperm.slane %v345, 3
        %v396 = vperm.slane %v345, 7
        %v399 = vperm.slane %v395, 3
        %v400 = vperm.slane %v396, 3
        %v401 = vmul.f32 %v393, %v399
        %v402 = vmul.f32 %v393, %v400
        %v403 = vadd.f32 %v389, %v401
        %v404 = vadd.f32 %v390, %v402
        %406 = vset.pattern.permute.xlu0 0
        %407 = vperm.xlu0 %406, %v348
        %v408 = vpop.permute.xlu0 %407
        %v411 = vperm.slane %v346, 0
        %v412 = vperm.slane %v346, 4
        %v415 = vperm.slane %v411, 0
        %v416 = vperm.slane %v412, 0
        %v417 = vmul.f32 %v408, %v415
        %v418 = vmul.f32 %v408, %v416
        %419 = vset.pattern.permute.xlu0 1
        %420 = vperm.xlu0 %419, %v348
        %v421 = vpop.permute.xlu0 %420
        %v423 = vperm.slane %v346, 1
        %v424 = vperm.slane %v346, 5
        %v427 = vperm.slane %v423, 1
        %v428 = vperm.slane %v424, 1
        %v429 = vmul.f32 %v421, %v427
        %v430 = vmul.f32 %v421, %v428
        %v431 = vadd.f32 %v417, %v429
        %v432 = vadd.f32 %v418, %v430
        %433 = vset.pattern.permute.xlu0 2
        %434 = vperm.xlu0 %433, %v348
        %v435 = vpop.permute.xlu0 %434
        %v437 = vperm.slane %v346, 2
        %v438 = vperm.slane %v346, 6
        %v441 = vperm.slane %v437, 2
        %v442 = vperm.slane %v438, 2
        %v443 = vmul.f32 %v435, %v441
        %v444 = vmul.f32 %v435, %v442
        %v445 = vadd.f32 %v431, %v443
        %v446 = vadd.f32 %v432, %v444
        %447 = vset.pattern.permute.xlu0 3
        %448 = vperm.xlu0 %447, %v348
        %v449 = vpop.permute.xlu0 %448
        %v451 = vperm.slane %v346, 3
        %v452 = vperm.slane %v346, 7
        %v455 = vperm.slane %v451, 3
        %v456 = vperm.slane %v452, 3
        %v457 = vmul.f32 %v449, %v455
        %v458 = vmul.f32 %v449, %v456
        %v459 = vadd.f32 %v445, %v457
        %v460 = vadd.f32 %v446, %v458
        %v461 = vadd.f32 %v403, %v459
        %v462 = vadd.f32 %v404, %v460
        %v463 = vld [vmem:[%s4] sm:$0xff]
        %465 = vset.pattern.permute.xlu0 0
        %466 = vperm.xlu0 %465, %v463
        %v467 = vpop.permute.xlu0 %466
        %v469 = vadd.f32 %v461, %v467
        %v470 = vadd.f32 %v462, %v467
        %v471 = vmax.f32 %v469, 0.0
        %v472 = vmax.f32 %v470, 0.0
        %v473 = vld [vmem:[%s5] sm:$0xff]
        %475 = vset.pattern.permute.xlu0 0
        %476 = vperm.xlu0 %475, %v473
        %v477 = vpop.permute.xlu0 %476
        %v479 = vmul.f32 %v471, %v477
        %v480 = vmul.f32 %v472, %v477
        %v481 = vrot.slane %v479, 4
        %v482 = vadd.f32 %v479, %v481
        %v483 = vrot.slane %v482, 2
        %v484 = vadd.f32 %v482, %v483
        %v485 = vrot.slane %v484, 1
        %v486 = vadd.f32 %v484, %v485
        %v487 = vrot.slane %v480, 4
        %v488 = vadd.f32 %v480, %v487
        %v489 = vrot.slane %v488, 2
        %v490 = vadd.f32 %v488, %v489
        %v491 = vrot.slane %v490, 1
        %v492 = vadd.f32 %v490, %v491
        %s493 = sld [smem:[#allocation2]]
        %v494 = vstv %s493
        %v495 = vadd.f32 %v486, %v494
        %v496 = vadd.f32 %v492, %v494
        %v497 = vsub.f32 0.0, %v495
        %v498 = vsub.f32 0.0, %v496
        %v499 = vmul.f32 %v497, 1.442695
        %v500 = vpow.pop %v499
        %v501 = vmul.f32 %v498, 1.442695
        %v502 = vpow.pop %v501
        %v503 = vadd.f32 %v500, 1.0
        %v504 = vadd.f32 %v502, 1.0
        %v505 = vrcp.pop %v503
        %v506 = vrcp.pop %v504
        %v509 = vrot.slane %v506, 4
        %vm510 = vcmask 1043456
        %v511 = vsel %vm510, %v505, %v509
        %v513 = vmul.f32 %v346, %v511
        %514 = vst [vmem:[%s323] sm:$0xff] %v513
        %s515 = sand.u32 %s205, 1
        %s516 = scalar_lea.sflag [#allocation4], %s515
        %s517 = sand.u32 %s205, 1
        %s518 = smul.addr %s517, 8
        %s519 = scalar_lea.vmem [#allocation3], %s518
        // Predicated region
        $region49: #{tpu_custom_call.1} parent=47 // pred_check
          %p520 = pneg %p215
        $region50: #{tpu_custom_call.1} parent=47 // pred_check_branch
          %522 = sbr.rel (%p520) target = $region52
        $region51: #{tpu_custom_call.1} parent=47 // pred_region
          %s523 = smul.u32 2, %s27
          %525 = vsyncadd %s516, 0
          %s526 = smul.addr %s26, 2
          %s527 = sadd.s32 %s523, %s526
          %s528 = smul.addr %s527, 4
          %s529 = scalar_lea.hbm %s7, %s528
          %s531 = sshll.u32 %s519, 4
          %s532 = int_to_ptr.vmem [resolvable:$true] %s531
          %s533 = sshll.u32 %s529, 4
          %s534 = int_to_ptr.hbm [resolvable:$true] %s533
          %536 = dma.vmem_to_hbm [thread:$0]  %s532, 128, %s534, %s516
        $region52: #{tpu_custom_call.1} parent=47 // pred_fallthru
          _
      $region48: #{tpu_custom_call.1} parent=5 // pred_fallthru
        _
      %p537 = scmp.le.s32.totalorder 2, %s17
      // Predicated region
      $region53: #{tpu_custom_call.1} parent=5 // pred_check
        %p538 = pneg %p537
      $region54: #{tpu_custom_call.1} parent=5 // pred_check_branch
        %540 = sbr.rel (%p538) target = $region56
      $region55: #{tpu_custom_call.1} parent=5 // pred_region
        %s541 = ssub.s32 %s17, 2
        // Predicated region
        $region57: #{tpu_custom_call.1} parent=55 // pred_check
          %p542 = pneg %p221
        $region58: #{tpu_custom_call.1} parent=55 // pred_check_branch
          %544 = sbr.rel (%p542) target = $region60
        $region59: #{tpu_custom_call.1} parent=55 // pred_region
          %s545 = sand.u32 %s206, 1
          %s546 = scalar_lea.sflag [#allocation4], %s545
          %s547 = sand.u32 %s206, 1
          %s548 = smul.addr %s547, 8
          %s549 = scalar_lea.vmem [#allocation3], %s548
          %551 = dma.done %s546, 128
        $region60: #{tpu_custom_call.1} parent=55 // pred_fallthru
          _
      $region56: #{tpu_custom_call.1} parent=5 // pred_fallthru
        _
    $region6: #{tpu_custom_call.1} parent=1 // loop_footer
      %s21 = sadd.s32 1, %s17
    $region7: #{tpu_custom_call.1} parent=1 // loop_footer_branch
      %16 = sbr.rel target = $region3
    $region8: #{tpu_custom_call.1} parent=1 // loop_exit
      _
    %552 = vsyncpa [#allocation4], 1
    %s553 = scalar_lea.sflag [#allocation4], 1
    %554 = vsyncpa %s553, 1

</llo_original>
